<compile_context>
chip_gen: v6e
topology: v6e:2x2x1
jax: 0.10.0
libtpu: 0.0.40
codegen_flags: <defaults>
</compile_context>

<pallas_src>
import jax
import jax.numpy as jnp
from jax.experimental import pallas as pl
from jax.experimental.pallas import tpu as pltpu

NUM_RELATIONS = 5   # RGCNConv(emb_dim, emb_dim, 5, 4, ...)
NUM_BASES = 4


# ---------------------------------------------------------------------------
# One-time graph preprocessing (plain JAX/XLA, off the hot path)
# ---------------------------------------------------------------------------
def build_message_op(edge_src, edge_dst, edge_type, num_nodes):
    """M_ext[i, r*N+j] = (#edges j->i of rel r)/max(in_deg(i),1); last block=I."""
    f32 = jnp.float32
    src_oh = jax.nn.one_hot(edge_src, num_nodes, dtype=f32)       # [E, N]
    dst_oh = jax.nn.one_hot(edge_dst, num_nodes, dtype=f32)       # [E, N]
    deg = dst_oh.sum(axis=0)                                      # total in-degree
    inv_deg = 1.0 / jnp.maximum(deg, 1.0)                         # 0-deg -> aggr 0
    a_norm = dst_oh.T * inv_deg[:, None]                          # [N, E]
    blocks = []
    for r in range(NUM_RELATIONS):
        mask = (edge_type == r).astype(f32)                       # [E]
        blocks.append(jnp.dot(a_norm * mask[None, :], src_oh))    # [N, N]
    blocks.append(jnp.eye(num_nodes, dtype=f32))                  # root/self block
    return jnp.concatenate(blocks, axis=1)                        # [N, (R+1)*N]


# ---------------------------------------------------------------------------
# Fused multi-layer RGCN kernel: single invocation, layers unrolled
# ---------------------------------------------------------------------------
def fused_rgcn_kernel(m_ref, x_ref, w_ref, b_ref, out_ref):
    """m_ref: [N,(R+1)*N]  x_ref: [N,D]  w_ref: [L,(R+1)*D,D]  b_ref: [L,1,D]."""
    f32 = jnp.float32
    L, K, D = w_ref.shape
    n_blk = K // D                         # R + 1 (relations + root)

    m = m_ref[...]                         # resident across all layers
    h = x_ref[...].astype(f32)             # h lives in values/vregs, not VMEM

    for l in range(L):                     # statically unrolled layer loop
        w_l = w_ref[l]                     # [(R+1)*D, D]
        # (R+1) tiny K=D dots, sublane-stacked; the dominant N^2 aggregation
        # (plus the root/self term via the identity block of m) is then ONE
        # MXU contraction with K=(R+1)*N.
        hw = jnp.concatenate(
            [jnp.dot(h, w_l[k * D:(k + 1) * D, :], preferred_element_type=f32)
             for k in range(n_blk)],
            axis=0)                                              # [(R+1)*N, D]
        out = jnp.dot(m, hw, preferred_element_type=f32) + b_ref[l]
        h_new = out + 1e-6                 # GNN wrapper epilogue (+1e-6)
        if l != L - 1:
            h = jnp.maximum(h_new, 0.0)    # ReLU only feeds the next layer
        else:
            out_ref[...] = h_new.astype(out_ref.dtype)   # last layer: pre-ReLU


def fused_rgcn_layers(m, x, w_all, bias):
    N, D = x.shape
    L, K, _ = w_all.shape
    vmem = pl.BlockSpec(memory_space=pltpu.MemorySpace.VMEM)
    flops = int(L * (2 * N * D * K + 2 * N * m.shape[1] * D + 4 * N * D))
    bytes_accessed = int(4 * (m.size + x.size + w_all.size + bias.size + N * D))
    return pl.pallas_call(
        fused_rgcn_kernel,
        out_shape=jax.ShapeDtypeStruct((N, D), jnp.float32),
        in_specs=[vmem, vmem, vmem, vmem],
        out_specs=vmem,
        cost_estimate=pl.CostEstimate(flops=flops, transcendentals=0,
                                      bytes_accessed=bytes_accessed),
    )(m, x, w_all, bias)


# ---------------------------------------------------------------------------
# Parameter folding: W = att @ basis.view(B, D*D), vstack(W_0..W_{R-1}, root)
# ---------------------------------------------------------------------------
def fold_params(params_list):
    w_all, bias = [], []
    for p in params_list:
        B, D, _ = p["basis"].shape
        R = p["att"].shape[0]
        w = jnp.dot(p["att"], p["basis"].reshape(B, D * D))      # [R, D*D]
        w_all.append(jnp.concatenate([w.reshape(R * D, D), p["root"]], axis=0))
        bias.append(p["bias"])
    return jnp.stack(w_all), jnp.stack(bias)                     # [L,(R+1)D,D],[L,1,D]


def gnn_forward(x, edge_index, edge_attr, edge_type, params_list):
    """GNN.forward with JK='last', drop_ratio=0, gnn_type='gcn' (RGCNConv)."""
    # edge_encoder(edge_attr) is computed by the PyTorch module but never
    # consumed by RGCNConv.message/update, so it cannot affect the output.
    del edge_attr
    N = x.shape[0]
    src = edge_index[0].astype(jnp.int32)
    dst = edge_index[1].astype(jnp.int32)
    et = edge_type.reshape(-1).astype(jnp.int32)

    m = build_message_op(src, dst, et, N)                        # [N,(R+1)*N] once
    w_all, bias = fold_params(params_list)
    return fused_rgcn_layers(m, x.astype(jnp.float32), w_all, bias)


def init_layer_params(key, emb_dim):
    kb, ka, kr, kbias = jax.random.split(key, 4)
    scale = 1.0 / jnp.sqrt(jnp.float32(emb_dim))
    return {
        "basis": jax.random.normal(kb, (NUM_BASES, emb_dim, emb_dim),
                                   jnp.float32) * scale,
        "att": jax.random.normal(ka, (NUM_RELATIONS, NUM_BASES),
                                 jnp.float32) * 0.5,
        "root": jax.random.normal(kr, (emb_dim, emb_dim), jnp.float32) * scale,
        "bias": jax.random.normal(kbias, (1, emb_dim), jnp.float32) * 0.1,
    }


# ---------------------------------------------------------------------------
# Pure-JAX reference (edge-wise, scatter-mean) for a correctness check
# ---------------------------------------------------------------------------
def gnn_reference(x, edge_index, edge_type, params_list):
    src = edge_index[0].astype(jnp.int32)
    dst = edge_index[1].astype(jnp.int32)
    et = edge_type.reshape(-1).astype(jnp.int32)
    N, D = x.shape
    L = len(params_list)
    h = x.astype(jnp.float32)
    for l, p in enumerate(params_list):
        w = jnp.einsum("rb,bde->rde", p["att"], p["basis"])     # [R, D, D]
        msg = jnp.einsum("ed,edf->ef", h[src], w[et])           # [E, D]
        summed = jnp.zeros((N, D), jnp.float32).at[dst].add(msg)
        cnt = jnp.zeros((N,), jnp.float32).at[dst].add(1.0)
        aggr = summed / jnp.maximum(cnt, 1.0)[:, None]
        out = aggr + h @ p["root"] + p["bias"]
        h = out + 1e-6
        if l != L - 1:
            h = jnp.maximum(h, 0.0)
    return h


if __name__ == "__main__":
    N, E, EMB_DIM = 16, 32, 32
    NUM_LAYER = 2

    key = jax.random.PRNGKey(0)
    kx, kei, kea, ket, kp = jax.random.split(key, 5)

    x = jax.random.normal(kx, (N, EMB_DIM), jnp.float32)
    edge_index = jax.random.randint(kei, (2, E), 0, N, jnp.int32)
    edge_attr = jax.random.normal(kea, (E, 4), jnp.float32)   # unused by output
    edge_type = jax.random.randint(ket, (E, 1), 0, NUM_RELATIONS, jnp.int32)

    layer_keys = jax.random.split(kp, NUM_LAYER)
    params_list = [init_layer_params(layer_keys[i], EMB_DIM)
                   for i in range(NUM_LAYER)]

    out = gnn_forward(x, edge_index, edge_attr, edge_type, params_list)
    out = jax.block_until_ready(out)
    assert out.shape == (N, EMB_DIM)

    ref = jax.block_until_ready(
        gnn_reference(x, edge_index, edge_type, params_list))
    err = float(jnp.max(jnp.abs(out - ref)))
    assert err < 1e-3, f"mismatch vs reference: max abs err = {err}"

    print("KERNEL_OK")
</pallas_src>

<mosaic_0001>
module attributes {stable_mosaic.version = 11 : i64} {
  func.func @fused_rgcn_kernel(%arg0: memref<16x96xf32, #tpu.memory_space<vmem>>, %arg1: memref<16x32xf32, #tpu.memory_space<vmem>>, %arg2: memref<2x192x32xf32, #tpu.memory_space<vmem>>, %arg3: memref<2x1x32xf32, #tpu.memory_space<vmem>>, %arg4: memref<16x32xf32, #tpu.memory_space<vmem>>) attributes {dimension_semantics = [], scalar_prefetch = 0 : i64, scratch_operands = 0 : i64, tpu.core_type = #tpu.core_type<tc>} {
    %c0 = arith.constant 0 : index
    %c0_0 = arith.constant 0 : index
    %0 = vector.load %arg0[%c0, %c0_0] : memref<16x96xf32, #tpu.memory_space<vmem>>, vector<16x96xf32>
    %c0_1 = arith.constant 0 : index
    %c0_2 = arith.constant 0 : index
    %1 = vector.load %arg1[%c0_1, %c0_2] : memref<16x32xf32, #tpu.memory_space<vmem>>, vector<16x32xf32>
    %c0_3 = arith.constant 0 : index
    %c0_4 = arith.constant 0 : index
    %c0_5 = arith.constant 0 : index
    %2 = vector.load %arg2[%c0_3, %c0_4, %c0_5] : memref<2x192x32xf32, #tpu.memory_space<vmem>>, vector<1x192x32xf32>
    %3 = vector.shape_cast %2 : vector<1x192x32xf32> to vector<192x32xf32>
    %4 = vector.extract_strided_slice %3 {offsets = [0, 0], sizes = [32, 32], strides = [1, 1]} : vector<192x32xf32> to vector<32x32xf32>
    %cst = arith.constant dense<0.000000e+00> : vector<16x32xf32>
    %5 = tpu.matmul %1, %4, %cst {dimension_numbers = #tpu.dot_dimension_numbers<[1], [0], [0], [1], [0, 0, 1, 1], [], []>} : vector<16x32xf32>, vector<32x32xf32>, vector<16x32xf32> -> vector<16x32xf32>
    %6 = vector.extract_strided_slice %3 {offsets = [32, 0], sizes = [32, 32], strides = [1, 1]} : vector<192x32xf32> to vector<32x32xf32>
    %cst_6 = arith.constant dense<0.000000e+00> : vector<16x32xf32>
    %7 = tpu.matmul %1, %6, %cst_6 {dimension_numbers = #tpu.dot_dimension_numbers<[1], [0], [0], [1], [0, 0, 1, 1], [], []>} : vector<16x32xf32>, vector<32x32xf32>, vector<16x32xf32> -> vector<16x32xf32>
    %8 = vector.extract_strided_slice %3 {offsets = [64, 0], sizes = [32, 32], strides = [1, 1]} : vector<192x32xf32> to vector<32x32xf32>
    %cst_7 = arith.constant dense<0.000000e+00> : vector<16x32xf32>
    %9 = tpu.matmul %1, %8, %cst_7 {dimension_numbers = #tpu.dot_dimension_numbers<[1], [0], [0], [1], [0, 0, 1, 1], [], []>} : vector<16x32xf32>, vector<32x32xf32>, vector<16x32xf32> -> vector<16x32xf32>
    %10 = vector.extract_strided_slice %3 {offsets = [96, 0], sizes = [32, 32], strides = [1, 1]} : vector<192x32xf32> to vector<32x32xf32>
    %cst_8 = arith.constant dense<0.000000e+00> : vector<16x32xf32>
    %11 = tpu.matmul %1, %10, %cst_8 {dimension_numbers = #tpu.dot_dimension_numbers<[1], [0], [0], [1], [0, 0, 1, 1], [], []>} : vector<16x32xf32>, vector<32x32xf32>, vector<16x32xf32> -> vector<16x32xf32>
    %12 = vector.extract_strided_slice %3 {offsets = [128, 0], sizes = [32, 32], strides = [1, 1]} : vector<192x32xf32> to vector<32x32xf32>
    %cst_9 = arith.constant dense<0.000000e+00> : vector<16x32xf32>
    %13 = tpu.matmul %1, %12, %cst_9 {dimension_numbers = #tpu.dot_dimension_numbers<[1], [0], [0], [1], [0, 0, 1, 1], [], []>} : vector<16x32xf32>, vector<32x32xf32>, vector<16x32xf32> -> vector<16x32xf32>
    %14 = vector.extract_strided_slice %3 {offsets = [160, 0], sizes = [32, 32], strides = [1, 1]} : vector<192x32xf32> to vector<32x32xf32>
    %cst_10 = arith.constant dense<0.000000e+00> : vector<16x32xf32>
    %15 = tpu.matmul %1, %14, %cst_10 {dimension_numbers = #tpu.dot_dimension_numbers<[1], [0], [0], [1], [0, 0, 1, 1], [], []>} : vector<16x32xf32>, vector<32x32xf32>, vector<16x32xf32> -> vector<16x32xf32>
    %16 = tpu.concatenate %5, %7, %9, %11, %13, %15 in 0 : vector<16x32xf32>, vector<16x32xf32>, vector<16x32xf32>, vector<16x32xf32>, vector<16x32xf32>, vector<16x32xf32> -> vector<96x32xf32>
    %cst_11 = arith.constant dense<0.000000e+00> : vector<16x32xf32>
    %17 = tpu.matmul %0, %16, %cst_11 {dimension_numbers = #tpu.dot_dimension_numbers<[1], [0], [0], [1], [0, 0, 1, 1], [], []>} : vector<16x96xf32>, vector<96x32xf32>, vector<16x32xf32> -> vector<16x32xf32>
    %c0_12 = arith.constant 0 : index
    %c0_13 = arith.constant 0 : index
    %c0_14 = arith.constant 0 : index
    %18 = vector.load %arg3[%c0_12, %c0_13, %c0_14] : memref<2x1x32xf32, #tpu.memory_space<vmem>>, vector<1x1x32xf32>
    %19 = vector.shape_cast %18 : vector<1x1x32xf32> to vector<1x32xf32>
    %20 = vector.broadcast %19 : vector<1x32xf32> to vector<16x32xf32>
    %21 = arith.addf %17, %20 : vector<16x32xf32>
    %cst_15 = arith.constant 9.99999997E-7 : f32
    %22 = vector.broadcast %cst_15 : f32 to vector<16x32xf32>
    %23 = arith.addf %21, %22 : vector<16x32xf32>
    %cst_16 = arith.constant 0.000000e+00 : f32
    %24 = vector.broadcast %cst_16 : f32 to vector<16x32xf32>
    %25 = arith.maximumf %23, %24 : vector<16x32xf32>
    %c1 = arith.constant 1 : index
    %c0_17 = arith.constant 0 : index
    %c0_18 = arith.constant 0 : index
    %26 = vector.load %arg2[%c1, %c0_17, %c0_18] : memref<2x192x32xf32, #tpu.memory_space<vmem>>, vector<1x192x32xf32>
    %27 = vector.shape_cast %26 : vector<1x192x32xf32> to vector<192x32xf32>
    %28 = vector.extract_strided_slice %27 {offsets = [0, 0], sizes = [32, 32], strides = [1, 1]} : vector<192x32xf32> to vector<32x32xf32>
    %cst_19 = arith.constant dense<0.000000e+00> : vector<16x32xf32>
    %29 = tpu.matmul %25, %28, %cst_19 {dimension_numbers = #tpu.dot_dimension_numbers<[1], [0], [0], [1], [0, 0, 1, 1], [], []>} : vector<16x32xf32>, vector<32x32xf32>, vector<16x32xf32> -> vector<16x32xf32>
    %30 = vector.extract_strided_slice %27 {offsets = [32, 0], sizes = [32, 32], strides = [1, 1]} : vector<192x32xf32> to vector<32x32xf32>
    %cst_20 = arith.constant dense<0.000000e+00> : vector<16x32xf32>
    %31 = tpu.matmul %25, %30, %cst_20 {dimension_numbers = #tpu.dot_dimension_numbers<[1], [0], [0], [1], [0, 0, 1, 1], [], []>} : vector<16x32xf32>, vector<32x32xf32>, vector<16x32xf32> -> vector<16x32xf32>
    %32 = vector.extract_strided_slice %27 {offsets = [64, 0], sizes = [32, 32], strides = [1, 1]} : vector<192x32xf32> to vector<32x32xf32>
    %cst_21 = arith.constant dense<0.000000e+00> : vector<16x32xf32>
    %33 = tpu.matmul %25, %32, %cst_21 {dimension_numbers = #tpu.dot_dimension_numbers<[1], [0], [0], [1], [0, 0, 1, 1], [], []>} : vector<16x32xf32>, vector<32x32xf32>, vector<16x32xf32> -> vector<16x32xf32>
    %34 = vector.extract_strided_slice %27 {offsets = [96, 0], sizes = [32, 32], strides = [1, 1]} : vector<192x32xf32> to vector<32x32xf32>
    %cst_22 = arith.constant dense<0.000000e+00> : vector<16x32xf32>
    %35 = tpu.matmul %25, %34, %cst_22 {dimension_numbers = #tpu.dot_dimension_numbers<[1], [0], [0], [1], [0, 0, 1, 1], [], []>} : vector<16x32xf32>, vector<32x32xf32>, vector<16x32xf32> -> vector<16x32xf32>
    %36 = vector.extract_strided_slice %27 {offsets = [128, 0], sizes = [32, 32], strides = [1, 1]} : vector<192x32xf32> to vector<32x32xf32>
    %cst_23 = arith.constant dense<0.000000e+00> : vector<16x32xf32>
    %37 = tpu.matmul %25, %36, %cst_23 {dimension_numbers = #tpu.dot_dimension_numbers<[1], [0], [0], [1], [0, 0, 1, 1], [], []>} : vector<16x32xf32>, vector<32x32xf32>, vector<16x32xf32> -> vector<16x32xf32>
    %38 = vector.extract_strided_slice %27 {offsets = [160, 0], sizes = [32, 32], strides = [1, 1]} : vector<192x32xf32> to vector<32x32xf32>
    %cst_24 = arith.constant dense<0.000000e+00> : vector<16x32xf32>
    %39 = tpu.matmul %25, %38, %cst_24 {dimension_numbers = #tpu.dot_dimension_numbers<[1], [0], [0], [1], [0, 0, 1, 1], [], []>} : vector<16x32xf32>, vector<32x32xf32>, vector<16x32xf32> -> vector<16x32xf32>
    %40 = tpu.concatenate %29, %31, %33, %35, %37, %39 in 0 : vector<16x32xf32>, vector<16x32xf32>, vector<16x32xf32>, vector<16x32xf32>, vector<16x32xf32>, vector<16x32xf32> -> vector<96x32xf32>
    %cst_25 = arith.constant dense<0.000000e+00> : vector<16x32xf32>
    %41 = tpu.matmul %0, %40, %cst_25 {dimension_numbers = #tpu.dot_dimension_numbers<[1], [0], [0], [1], [0, 0, 1, 1], [], []>} : vector<16x96xf32>, vector<96x32xf32>, vector<16x32xf32> -> vector<16x32xf32>
    %c1_26 = arith.constant 1 : index
    %c0_27 = arith.constant 0 : index
    %c0_28 = arith.constant 0 : index
    %42 = vector.load %arg3[%c1_26, %c0_27, %c0_28] : memref<2x1x32xf32, #tpu.memory_space<vmem>>, vector<1x1x32xf32>
    %43 = vector.shape_cast %42 : vector<1x1x32xf32> to vector<1x32xf32>
    %44 = vector.broadcast %43 : vector<1x32xf32> to vector<16x32xf32>
    %45 = arith.addf %41, %44 : vector<16x32xf32>
    %cst_29 = arith.constant 9.99999997E-7 : f32
    %46 = vector.broadcast %cst_29 : f32 to vector<16x32xf32>
    %47 = arith.addf %45, %46 : vector<16x32xf32>
    %c0_30 = arith.constant 0 : index
    %c0_31 = arith.constant 0 : index
    %48 = vector.load %arg4[%c0_30, %c0_31] : memref<16x32xf32, #tpu.memory_space<vmem>>, vector<16x32xf32>
    tpu.vector_store %arg4[%c0_30, %c0_31], %47 {strides = array<i32>} : memref<16x32xf32, #tpu.memory_space<vmem>>, vector<16x32xf32>,
    return
  }
}

</mosaic_0001>

<llo_original>
// kernel: tpu_custom_call.1
$region0: #{tpu_custom_call.1}
  #allocation0 [shape = 'u32[]', space=smem, size = 0x4, offset = 0x4, fixed_abs, tag = 'smem constant byte address 0x4 - core index']
  #allocation1 [shape = 'u32[144,128]{1,0:T(1,128)}', space=vmem, size = 0x12000, scoped, tag = 'internal scratch']
  %s0 = inlined_call_operand.vmem [shape: f32[16,96], index: 0, kind: input, shape index: {}]
  %s1 = inlined_call_operand.vmem [shape: f32[16,32], index: 1, kind: input, shape index: {}]
  %s2 = inlined_call_operand.vmem [shape: f32[2,192,32], index: 2, kind: input, shape index: {}]
  %s3 = inlined_call_operand.vmem [shape: f32[2,1,32], index: 3, kind: input, shape index: {}]
  %s4 = inlined_call_operand.hbm [shape: f32[16,32], index: 4, kind: output, shape index: {}]
  %s5 = sld [smem:[#allocation0]]
  $region26: #{tpu_custom_call.1} parent=0
    _
  %s7 = ssub.s32 1, %s5
  %s8 = scalar_select 0, %s7, %s5
  $region1: #{tpu_custom_call.1} parent=0
    #allocation2 [shape = 'u8[8192]{0}', space=vmem, size = 0x2000, scoped, tag = 'output window, operand 0, single buffered']
    #allocation3 [shape = 's32[1]{0}', space=sflag, size = 0x4, scoped, tag = 'scoped memory for tpu_custom_call.1']
    %9 = vsyncpa [#allocation3], 0
    // Predicated region
    $region2: #{tpu_custom_call.1} parent=1 // pred_check
      _
    $region3: #{tpu_custom_call.1} parent=1 // pred_check_branch
      %11 = sbr.rel (0) target = $region5
    $region4: #{tpu_custom_call.1} parent=1 // pred_region
      _
    $region5: #{tpu_custom_call.1} parent=1 // pred_fallthru
      _
    // Predicated region
    $region6: #{tpu_custom_call.1} parent=1 // pred_check
      _
    $region7: #{tpu_custom_call.1} parent=1 // pred_check_branch
      %13 = sbr.rel (0) target = $region9
    $region8: #{tpu_custom_call.1} parent=1 // pred_region
      _
    $region9: #{tpu_custom_call.1} parent=1 // pred_fallthru
      _
    // Predicated region
    $region10: #{tpu_custom_call.1} parent=1 // pred_check
      _
    $region11: #{tpu_custom_call.1} parent=1 // pred_check_branch
      %15 = sbr.rel (0) target = $region13
    $region12: #{tpu_custom_call.1} parent=1 // pred_region
      _
    $region13: #{tpu_custom_call.1} parent=1 // pred_fallthru
      _
    // Predicated region
    $region14: #{tpu_custom_call.1} parent=1 // pred_check
      _
    $region15: #{tpu_custom_call.1} parent=1 // pred_check_branch
      %17 = sbr.rel (0) target = $region17
    $region16: #{tpu_custom_call.1} parent=1 // pred_region
      _
    $region17: #{tpu_custom_call.1} parent=1 // pred_fallthru
      _
    %v18 = vld [vmem:[%s0] sm:$0xff]
    %v19 = vld [vmem:[%s0 + $0x8] sm:$0xff]
    %v20 = vld [vmem:[%s1] sm:$0xff]
    %v21 = vld [vmem:[%s1 + $0x8] sm:$0xff]
    %v22 = vld [vmem:[%s2] sm:$0xff]
    %v23 = vld [vmem:[%s2 + $0x8] sm:$0xff]
    %v24 = vld [vmem:[%s2 + $0x10] sm:$0xff]
    %v25 = vld [vmem:[%s2 + $0x18] sm:$0xff]
    %v26 = vld [vmem:[%s2 + $0x20] sm:$0xff]
    %v27 = vld [vmem:[%s2 + $0x28] sm:$0xff]
    %v28 = vld [vmem:[%s2 + $0x30] sm:$0xff]
    %v29 = vld [vmem:[%s2 + $0x38] sm:$0xff]
    %v30 = vld [vmem:[%s2 + $0x40] sm:$0xff]
    %v31 = vld [vmem:[%s2 + $0x48] sm:$0xff]
    %v32 = vld [vmem:[%s2 + $0x50] sm:$0xff]
    %v33 = vld [vmem:[%s2 + $0x58] sm:$0xff]
    %v34 = vld [vmem:[%s2 + $0x60] sm:$0xff]
    %v35 = vld [vmem:[%s2 + $0x68] sm:$0xff]
    %v36 = vld [vmem:[%s2 + $0x70] sm:$0xff]
    %v37 = vld [vmem:[%s2 + $0x78] sm:$0xff]
    %v38 = vld [vmem:[%s2 + $0x80] sm:$0xff]
    %v39 = vld [vmem:[%s2 + $0x88] sm:$0xff]
    %v40 = vld [vmem:[%s2 + $0x90] sm:$0xff]
    %v41 = vld [vmem:[%s2 + $0x98] sm:$0xff]
    %v42 = vld [vmem:[%s2 + $0xa0] sm:$0xff]
    %v43 = vld [vmem:[%s2 + $0xa8] sm:$0xff]
    %v44 = vld [vmem:[%s2 + $0xb0] sm:$0xff]
    %v45 = vld [vmem:[%s2 + $0xb8] sm:$0xff]
    %vm46 = vcmask 261120
    %v48 = vsel %vm46, %v20, 0
    %v51 = vsel %vm46, %v21, 0
    %53 = vmatprep.subr.mxu0 0.0
    %54 = vmatpush1.msra.mxu0 0.0
    %55 = vmatprep.subr.mxu0 0.0
    %56 = vmatpush1.msra.mxu0 0.0
    %57 = vmatprep.subr.mxu0 0.0
    %58 = vmatpush1.msra.mxu0 0.0
    %59 = vmatprep.subr.mxu0 0.0
    %60 = vmatpush1.msra.mxu0 0.0
    %61 = vmatprep.subr.mxu0 0.0
    %62 = vmatpush1.msra.mxu0 0.0
    %63 = vmatprep.subr.mxu0 0.0
    %64 = vmatpush1.msra.mxu0 0.0
    %65 = vmatprep.subr.mxu0 0.0
    %66 = vmatpush1.msra.mxu0 0.0
    %67 = vmatprep.subr.mxu0 0.0
    %68 = vmatpush1.msra.mxu0 0.0
    %69 = vmatprep.subr.mxu0 0.0
    %70 = vmatpush1.msra.mxu0 0.0
    %71 = vmatprep.subr.mxu0 0.0
    %72 = vmatpush1.msra.mxu0 0.0
    %73 = vmatprep.subr.mxu0 0.0
    %74 = vmatpush1.msra.mxu0 0.0
    %75 = vmatprep.subr.mxu0 0.0
    %76 = vmatpush1.msra.mxu0 0.0
    %77 = vmatprep.subr.mxu0 0.0
    %78 = vmatpush1.msra.mxu0 %v25
    %79 = vmatprep.subr.mxu0 0.0
    %80 = vmatpush1.msra.mxu0 %v24
    %81 = vmatprep.subr.mxu0 0.0
    %82 = vmatpush1.msra.mxu0 %v23
    %83 = vmatprep.subr.mxu0 0.0
    %84 = vmatpush1.msra.mxu0 %v22
    %85 = vmatprep.subr.mxu0 0.0
    %86 = vmatpush2.msra.mxu0 0.0
    %87 = vmatprep.subr.mxu0 0.0
    %88 = vmatpush2.msra.mxu0 0.0
    %89 = vmatprep.subr.mxu0 0.0
    %90 = vmatpush2.msra.mxu0 0.0
    %91 = vmatprep.subr.mxu0 0.0
    %92 = vmatpush2.msra.mxu0 0.0
    %93 = vmatprep.subr.mxu0 0.0
    %94 = vmatpush2.msra.mxu0 0.0
    %95 = vmatprep.subr.mxu0 0.0
    %96 = vmatpush2.msra.mxu0 0.0
    %97 = vmatprep.subr.mxu0 0.0
    %98 = vmatpush2.msra.mxu0 0.0
    %99 = vmatprep.subr.mxu0 0.0
    %100 = vmatpush2.msra.mxu0 0.0
    %101 = vmatprep.subr.mxu0 0.0
    %102 = vmatpush2.msra.mxu0 0.0
    %103 = vmatprep.subr.mxu0 0.0
    %104 = vmatpush2.msra.mxu0 0.0
    %105 = vmatprep.subr.mxu0 0.0
    %106 = vmatpush2.msra.mxu0 0.0
    %107 = vmatprep.subr.mxu0 0.0
    %108 = vmatpush2.msra.mxu0 0.0
    %109 = vmatprep.subr.mxu0 0.0
    %110 = vmatpush2.msra.mxu0 0.0
    %111 = vmatprep.subr.mxu0 0.0
    %112 = vmatpush2.msra.mxu0 0.0
    %113 = vmatprep.subr.mxu0 0.0
    %114 = vmatpush2.msra.mxu0 0.0
    %115 = vmatprep.subr.mxu0 0.0
    %116 = vmatpush2.msra.mxu0 0.0
    %117 = vmatprep.mubr.f32.mxu0 0.0
    %118 = vmatmul.mubr.f32.gmra.mxu0 %v48
    %v119 = vpop.f32.mrf.mxu0
    %v120 = vadd.f32 0.0, %v119
    %v121 = vpop.f32.mrf.mxu0
    %122 = vmatprep.mubr.f32.mxu0 0.0
    %123 = vmatmul.mubr.f32.gmra.mxu0 %v51
    %v124 = vpop.f32.mrf.mxu0
    %v125 = vadd.f32 0.0, %v124
    %v126 = vpop.f32.mrf.mxu0
    %127 = vdwg.mxu0
    %128 = vmatprep.subr.mxu0 0.0
    %129 = vmatpush1.msra.mxu0 0.0
    %130 = vmatprep.subr.mxu0 0.0
    %131 = vmatpush1.msra.mxu0 0.0
    %132 = vmatprep.subr.mxu0 0.0
    %133 = vmatpush1.msra.mxu0 0.0
    %134 = vmatprep.subr.mxu0 0.0
    %135 = vmatpush1.msra.mxu0 0.0
    %136 = vmatprep.subr.mxu0 0.0
    %137 = vmatpush1.msra.mxu0 0.0
    %138 = vmatprep.subr.mxu0 0.0
    %139 = vmatpush1.msra.mxu0 0.0
    %140 = vmatprep.subr.mxu0 0.0
    %141 = vmatpush1.msra.mxu0 0.0
    %142 = vmatprep.subr.mxu0 0.0
    %143 = vmatpush1.msra.mxu0 0.0
    %144 = vmatprep.subr.mxu0 0.0
    %145 = vmatpush1.msra.mxu0 0.0
    %146 = vmatprep.subr.mxu0 0.0
    %147 = vmatpush1.msra.mxu0 0.0
    %148 = vmatprep.subr.mxu0 0.0
    %149 = vmatpush1.msra.mxu0 0.0
    %150 = vmatprep.subr.mxu0 0.0
    %151 = vmatpush1.msra.mxu0 0.0
    %152 = vmatprep.subr.mxu0 0.0
    %153 = vmatpush1.msra.mxu0 %v29
    %154 = vmatprep.subr.mxu0 0.0
    %155 = vmatpush1.msra.mxu0 %v28
    %156 = vmatprep.subr.mxu0 0.0
    %157 = vmatpush1.msra.mxu0 %v27
    %158 = vmatprep.subr.mxu0 0.0
    %159 = vmatpush1.msra.mxu0 %v26
    %160 = vmatprep.subr.mxu0 0.0
    %161 = vmatpush2.msra.mxu0 0.0
    %162 = vmatprep.subr.mxu0 0.0
    %163 = vmatpush2.msra.mxu0 0.0
    %164 = vmatprep.subr.mxu0 0.0
    %165 = vmatpush2.msra.mxu0 0.0
    %166 = vmatprep.subr.mxu0 0.0
    %167 = vmatpush2.msra.mxu0 0.0
    %168 = vmatprep.subr.mxu0 0.0
    %169 = vmatpush2.msra.mxu0 0.0
    %170 = vmatprep.subr.mxu0 0.0
    %171 = vmatpush2.msra.mxu0 0.0
    %172 = vmatprep.subr.mxu0 0.0
    %173 = vmatpush2.msra.mxu0 0.0
    %174 = vmatprep.subr.mxu0 0.0
    %175 = vmatpush2.msra.mxu0 0.0
    %176 = vmatprep.subr.mxu0 0.0
    %177 = vmatpush2.msra.mxu0 0.0
    %178 = vmatprep.subr.mxu0 0.0
    %179 = vmatpush2.msra.mxu0 0.0
    %180 = vmatprep.subr.mxu0 0.0
    %181 = vmatpush2.msra.mxu0 0.0
    %182 = vmatprep.subr.mxu0 0.0
    %183 = vmatpush2.msra.mxu0 0.0
    %184 = vmatprep.subr.mxu0 0.0
    %185 = vmatpush2.msra.mxu0 0.0
    %186 = vmatprep.subr.mxu0 0.0
    %187 = vmatpush2.msra.mxu0 0.0
    %188 = vmatprep.subr.mxu0 0.0
    %189 = vmatpush2.msra.mxu0 0.0
    %190 = vmatprep.subr.mxu0 0.0
    %191 = vmatpush2.msra.mxu0 0.0
    %192 = vmatprep.mubr.f32.mxu0 0.0
    %193 = vmatmul.mubr.f32.gmra.mxu0 %v48
    %v194 = vpop.f32.mrf.mxu0
    %v195 = vadd.f32 0.0, %v194
    %v196 = vpop.f32.mrf.mxu0
    %197 = vmatprep.mubr.f32.mxu0 0.0
    %198 = vmatmul.mubr.f32.gmra.mxu0 %v51
    %v199 = vpop.f32.mrf.mxu0
    %v200 = vadd.f32 0.0, %v199
    %v201 = vpop.f32.mrf.mxu0
    %202 = vdwg.mxu0
    %203 = vmatprep.subr.mxu0 0.0
    %204 = vmatpush1.msra.mxu0 0.0
    %205 = vmatprep.subr.mxu0 0.0
    %206 = vmatpush1.msra.mxu0 0.0
    %207 = vmatprep.subr.mxu0 0.0
    %208 = vmatpush1.msra.mxu0 0.0
    %209 = vmatprep.subr.mxu0 0.0
    %210 = vmatpush1.msra.mxu0 0.0
    %211 = vmatprep.subr.mxu0 0.0
    %212 = vmatpush1.msra.mxu0 0.0
    %213 = vmatprep.subr.mxu0 0.0
    %214 = vmatpush1.msra.mxu0 0.0
    %215 = vmatprep.subr.mxu0 0.0
    %216 = vmatpush1.msra.mxu0 0.0
    %217 = vmatprep.subr.mxu0 0.0
    %218 = vmatpush1.msra.mxu0 0.0
    %219 = vmatprep.subr.mxu0 0.0
    %220 = vmatpush1.msra.mxu0 0.0
    %221 = vmatprep.subr.mxu0 0.0
    %222 = vmatpush1.msra.mxu0 0.0
    %223 = vmatprep.subr.mxu0 0.0
    %224 = vmatpush1.msra.mxu0 0.0
    %225 = vmatprep.subr.mxu0 0.0
    %226 = vmatpush1.msra.mxu0 0.0
    %227 = vmatprep.subr.mxu0 0.0
    %228 = vmatpush1.msra.mxu0 %v33
    %229 = vmatprep.subr.mxu0 0.0
    %230 = vmatpush1.msra.mxu0 %v32
    %231 = vmatprep.subr.mxu0 0.0
    %232 = vmatpush1.msra.mxu0 %v31
    %233 = vmatprep.subr.mxu0 0.0
    %234 = vmatpush1.msra.mxu0 %v30
    %235 = vmatprep.subr.mxu0 0.0
    %236 = vmatpush2.msra.mxu0 0.0
    %237 = vmatprep.subr.mxu0 0.0
    %238 = vmatpush2.msra.mxu0 0.0
    %239 = vmatprep.subr.mxu0 0.0
    %240 = vmatpush2.msra.mxu0 0.0
    %241 = vmatprep.subr.mxu0 0.0
    %242 = vmatpush2.msra.mxu0 0.0
    %243 = vmatprep.subr.mxu0 0.0
    %244 = vmatpush2.msra.mxu0 0.0
    %245 = vmatprep.subr.mxu0 0.0
    %246 = vmatpush2.msra.mxu0 0.0
    %247 = vmatprep.subr.mxu0 0.0
    %248 = vmatpush2.msra.mxu0 0.0
    %249 = vmatprep.subr.mxu0 0.0
    %250 = vmatpush2.msra.mxu0 0.0
    %251 = vmatprep.subr.mxu0 0.0
    %252 = vmatpush2.msra.mxu0 0.0
    %253 = vmatprep.subr.mxu0 0.0
    %254 = vmatpush2.msra.mxu0 0.0
    %255 = vmatprep.subr.mxu0 0.0
    %256 = vmatpush2.msra.mxu0 0.0
    %257 = vmatprep.subr.mxu0 0.0
    %258 = vmatpush2.msra.mxu0 0.0
    %259 = vmatprep.subr.mxu0 0.0
    %260 = vmatpush2.msra.mxu0 0.0
    %261 = vmatprep.subr.mxu0 0.0
    %262 = vmatpush2.msra.mxu0 0.0
    %263 = vmatprep.subr.mxu0 0.0
    %264 = vmatpush2.msra.mxu0 0.0
    %265 = vmatprep.subr.mxu0 0.0
    %266 = vmatpush2.msra.mxu0 0.0
    %267 = vmatprep.mubr.f32.mxu0 0.0
    %268 = vmatmul.mubr.f32.gmra.mxu0 %v48
    %v269 = vpop.f32.mrf.mxu0
    %v270 = vadd.f32 0.0, %v269
    %v271 = vpop.f32.mrf.mxu0
    %272 = vmatprep.mubr.f32.mxu0 0.0
    %273 = vmatmul.mubr.f32.gmra.mxu0 %v51
    %v274 = vpop.f32.mrf.mxu0
    %v275 = vadd.f32 0.0, %v274
    %v276 = vpop.f32.mrf.mxu0
    %277 = vdwg.mxu0
    %278 = vmatprep.subr.mxu0 0.0
    %279 = vmatpush1.msra.mxu0 0.0
    %280 = vmatprep.subr.mxu0 0.0
    %281 = vmatpush1.msra.mxu0 0.0
    %282 = vmatprep.subr.mxu0 0.0
    %283 = vmatpush1.msra.mxu0 0.0
    %284 = vmatprep.subr.mxu0 0.0
    %285 = vmatpush1.msra.mxu0 0.0
    %286 = vmatprep.subr.mxu0 0.0
    %287 = vmatpush1.msra.mxu0 0.0
    %288 = vmatprep.subr.mxu0 0.0
    %289 = vmatpush1.msra.mxu0 0.0
    %290 = vmatprep.subr.mxu0 0.0
    %291 = vmatpush1.msra.mxu0 0.0
    %292 = vmatprep.subr.mxu0 0.0
    %293 = vmatpush1.msra.mxu0 0.0
    %294 = vmatprep.subr.mxu0 0.0
    %295 = vmatpush1.msra.mxu0 0.0
    %296 = vmatprep.subr.mxu0 0.0
    %297 = vmatpush1.msra.mxu0 0.0
    %298 = vmatprep.subr.mxu0 0.0
    %299 = vmatpush1.msra.mxu0 0.0
    %300 = vmatprep.subr.mxu0 0.0
    %301 = vmatpush1.msra.mxu0 0.0
    %302 = vmatprep.subr.mxu0 0.0
    %303 = vmatpush1.msra.mxu0 %v37
    %304 = vmatprep.subr.mxu0 0.0
    %305 = vmatpush1.msra.mxu0 %v36
    %306 = vmatprep.subr.mxu0 0.0
    %307 = vmatpush1.msra.mxu0 %v35
    %308 = vmatprep.subr.mxu0 0.0
    %309 = vmatpush1.msra.mxu0 %v34
    %310 = vmatprep.subr.mxu0 0.0
    %311 = vmatpush2.msra.mxu0 0.0
    %312 = vmatprep.subr.mxu0 0.0
    %313 = vmatpush2.msra.mxu0 0.0
    %314 = vmatprep.subr.mxu0 0.0
    %315 = vmatpush2.msra.mxu0 0.0
    %316 = vmatprep.subr.mxu0 0.0
    %317 = vmatpush2.msra.mxu0 0.0
    %318 = vmatprep.subr.mxu0 0.0
    %319 = vmatpush2.msra.mxu0 0.0
    %320 = vmatprep.subr.mxu0 0.0
    %321 = vmatpush2.msra.mxu0 0.0
    %322 = vmatprep.subr.mxu0 0.0
    %323 = vmatpush2.msra.mxu0 0.0
    %324 = vmatprep.subr.mxu0 0.0
    %325 = vmatpush2.msra.mxu0 0.0
    %326 = vmatprep.subr.mxu0 0.0
    %327 = vmatpush2.msra.mxu0 0.0
    %328 = vmatprep.subr.mxu0 0.0
    %329 = vmatpush2.msra.mxu0 0.0
    %330 = vmatprep.subr.mxu0 0.0
    %331 = vmatpush2.msra.mxu0 0.0
    %332 = vmatprep.subr.mxu0 0.0
    %333 = vmatpush2.msra.mxu0 0.0
    %334 = vmatprep.subr.mxu0 0.0
    %335 = vmatpush2.msra.mxu0 0.0
    %336 = vmatprep.subr.mxu0 0.0
    %337 = vmatpush2.msra.mxu0 0.0
    %338 = vmatprep.subr.mxu0 0.0
    %339 = vmatpush2.msra.mxu0 0.0
    %340 = vmatprep.subr.mxu0 0.0
    %341 = vmatpush2.msra.mxu0 0.0
    %342 = vmatprep.mubr.f32.mxu0 0.0
    %343 = vmatmul.mubr.f32.gmra.mxu0 %v48
    %v344 = vpop.f32.mrf.mxu0
    %v345 = vadd.f32 0.0, %v344
    %v346 = vpop.f32.mrf.mxu0
    %347 = vmatprep.mubr.f32.mxu0 0.0
    %348 = vmatmul.mubr.f32.gmra.mxu0 %v51
    %v349 = vpop.f32.mrf.mxu0
    %v350 = vadd.f32 0.0, %v349
    %v351 = vpop.f32.mrf.mxu0
    %352 = vdwg.mxu0
    %353 = vmatprep.subr.mxu0 0.0
    %354 = vmatpush1.msra.mxu0 0.0
    %355 = vmatprep.subr.mxu0 0.0
    %356 = vmatpush1.msra.mxu0 0.0
    %357 = vmatprep.subr.mxu0 0.0
    %358 = vmatpush1.msra.mxu0 0.0
    %359 = vmatprep.subr.mxu0 0.0
    %360 = vmatpush1.msra.mxu0 0.0
    %361 = vmatprep.subr.mxu0 0.0
    %362 = vmatpush1.msra.mxu0 0.0
    %363 = vmatprep.subr.mxu0 0.0
    %364 = vmatpush1.msra.mxu0 0.0
    %365 = vmatprep.subr.mxu0 0.0
    %366 = vmatpush1.msra.mxu0 0.0
    %367 = vmatprep.subr.mxu0 0.0
    %368 = vmatpush1.msra.mxu0 0.0
    %369 = vmatprep.subr.mxu0 0.0
    %370 = vmatpush1.msra.mxu0 0.0
    %371 = vmatprep.subr.mxu0 0.0
    %372 = vmatpush1.msra.mxu0 0.0
    %373 = vmatprep.subr.mxu0 0.0
    %374 = vmatpush1.msra.mxu0 0.0
    %375 = vmatprep.subr.mxu0 0.0
    %376 = vmatpush1.msra.mxu0 0.0
    %377 = vmatprep.subr.mxu0 0.0
    %378 = vmatpush1.msra.mxu0 %v41
    %379 = vmatprep.subr.mxu0 0.0
    %380 = vmatpush1.msra.mxu0 %v40
    %381 = vmatprep.subr.mxu0 0.0
    %382 = vmatpush1.msra.mxu0 %v39
    %383 = vmatprep.subr.mxu0 0.0
    %384 = vmatpush1.msra.mxu0 %v38
    %385 = vmatprep.subr.mxu0 0.0
    %386 = vmatpush2.msra.mxu0 0.0
    %387 = vmatprep.subr.mxu0 0.0
    %388 = vmatpush2.msra.mxu0 0.0
    %389 = vmatprep.subr.mxu0 0.0
    %390 = vmatpush2.msra.mxu0 0.0
    %391 = vmatprep.subr.mxu0 0.0
    %392 = vmatpush2.msra.mxu0 0.0
    %393 = vmatprep.subr.mxu0 0.0
    %394 = vmatpush2.msra.mxu0 0.0
    %395 = vmatprep.subr.mxu0 0.0
    %396 = vmatpush2.msra.mxu0 0.0
    %397 = vmatprep.subr.mxu0 0.0
    %398 = vmatpush2.msra.mxu0 0.0
    %399 = vmatprep.subr.mxu0 0.0
    %400 = vmatpush2.msra.mxu0 0.0
    %401 = vmatprep.subr.mxu0 0.0
    %402 = vmatpush2.msra.mxu0 0.0
    %403 = vmatprep.subr.mxu0 0.0
    %404 = vmatpush2.msra.mxu0 0.0
    %405 = vmatprep.subr.mxu0 0.0
    %406 = vmatpush2.msra.mxu0 0.0
    %407 = vmatprep.subr.mxu0 0.0
    %408 = vmatpush2.msra.mxu0 0.0
    %409 = vmatprep.subr.mxu0 0.0
    %410 = vmatpush2.msra.mxu0 0.0
    %411 = vmatprep.subr.mxu0 0.0
    %412 = vmatpush2.msra.mxu0 0.0
    %413 = vmatprep.subr.mxu0 0.0
    %414 = vmatpush2.msra.mxu0 0.0
    %415 = vmatprep.subr.mxu0 0.0
    %416 = vmatpush2.msra.mxu0 0.0
    %417 = vmatprep.mubr.f32.mxu0 0.0
    %418 = vmatmul.mubr.f32.gmra.mxu0 %v48
    %v419 = vpop.f32.mrf.mxu0
    %v420 = vadd.f32 0.0, %v419
    %v421 = vpop.f32.mrf.mxu0
    %422 = vmatprep.mubr.f32.mxu0 0.0
    %423 = vmatmul.mubr.f32.gmra.mxu0 %v51
    %v424 = vpop.f32.mrf.mxu0
    %v425 = vadd.f32 0.0, %v424
    %v426 = vpop.f32.mrf.mxu0
    %427 = vdwg.mxu0
    %428 = vmatprep.subr.mxu0 0.0
    %429 = vmatpush1.msra.mxu0 0.0
    %430 = vmatprep.subr.mxu0 0.0
    %431 = vmatpush1.msra.mxu0 0.0
    %432 = vmatprep.subr.mxu0 0.0
    %433 = vmatpush1.msra.mxu0 0.0
    %434 = vmatprep.subr.mxu0 0.0
    %435 = vmatpush1.msra.mxu0 0.0
    %436 = vmatprep.subr.mxu0 0.0
    %437 = vmatpush1.msra.mxu0 0.0
    %438 = vmatprep.subr.mxu0 0.0
    %439 = vmatpush1.msra.mxu0 0.0
    %440 = vmatprep.subr.mxu0 0.0
    %441 = vmatpush1.msra.mxu0 0.0
    %442 = vmatprep.subr.mxu0 0.0
    %443 = vmatpush1.msra.mxu0 0.0
    %444 = vmatprep.subr.mxu0 0.0
    %445 = vmatpush1.msra.mxu0 0.0
    %446 = vmatprep.subr.mxu0 0.0
    %447 = vmatpush1.msra.mxu0 0.0
    %448 = vmatprep.subr.mxu0 0.0
    %449 = vmatpush1.msra.mxu0 0.0
    %450 = vmatprep.subr.mxu0 0.0
    %451 = vmatpush1.msra.mxu0 0.0
    %452 = vmatprep.subr.mxu0 0.0
    %453 = vmatpush1.msra.mxu0 %v45
    %454 = vmatprep.subr.mxu0 0.0
    %455 = vmatpush1.msra.mxu0 %v44
    %456 = vmatprep.subr.mxu0 0.0
    %457 = vmatpush1.msra.mxu0 %v43
    %458 = vmatprep.subr.mxu0 0.0
    %459 = vmatpush1.msra.mxu0 %v42
    %460 = vmatprep.subr.mxu0 0.0
    %461 = vmatpush2.msra.mxu0 0.0
    %462 = vmatprep.subr.mxu0 0.0
    %463 = vmatpush2.msra.mxu0 0.0
    %464 = vmatprep.subr.mxu0 0.0
    %465 = vmatpush2.msra.mxu0 0.0
    %466 = vmatprep.subr.mxu0 0.0
    %467 = vmatpush2.msra.mxu0 0.0
    %468 = vmatprep.subr.mxu0 0.0
    %469 = vmatpush2.msra.mxu0 0.0
    %470 = vmatprep.subr.mxu0 0.0
    %471 = vmatpush2.msra.mxu0 0.0
    %472 = vmatprep.subr.mxu0 0.0
    %473 = vmatpush2.msra.mxu0 0.0
    %474 = vmatprep.subr.mxu0 0.0
    %475 = vmatpush2.msra.mxu0 0.0
    %476 = vmatprep.subr.mxu0 0.0
    %477 = vmatpush2.msra.mxu0 0.0
    %478 = vmatprep.subr.mxu0 0.0
    %479 = vmatpush2.msra.mxu0 0.0
    %480 = vmatprep.subr.mxu0 0.0
    %481 = vmatpush2.msra.mxu0 0.0
    %482 = vmatprep.subr.mxu0 0.0
    %483 = vmatpush2.msra.mxu0 0.0
    %484 = vmatprep.subr.mxu0 0.0
    %485 = vmatpush2.msra.mxu0 0.0
    %486 = vmatprep.subr.mxu0 0.0
    %487 = vmatpush2.msra.mxu0 0.0
    %488 = vmatprep.subr.mxu0 0.0
    %489 = vmatpush2.msra.mxu0 0.0
    %490 = vmatprep.subr.mxu0 0.0
    %491 = vmatpush2.msra.mxu0 0.0
    %492 = vmatprep.mubr.f32.mxu0 0.0
    %493 = vmatmul.mubr.f32.gmra.mxu0 %v48
    %v494 = vpop.f32.mrf.mxu0
    %v495 = vadd.f32 0.0, %v494
    %v496 = vpop.f32.mrf.mxu0
    %497 = vmatprep.mubr.f32.mxu0 0.0
    %498 = vmatmul.mubr.f32.gmra.mxu0 %v51
    %v499 = vpop.f32.mrf.mxu0
    %v500 = vadd.f32 0.0, %v499
    %v501 = vpop.f32.mrf.mxu0
    %502 = vdwg.mxu0
    %v503 = vld [vmem:[%s3] sm:$0x1]
    %v505 = vlaneseq
    %v506 = vshrl.u32 %v505, 7
    %v507 = vsub.s32 0, %v506
    %v508 = vrot.slane %v503, %v507
    %vm510 = vcmask 785408
    %v512 = vsel %vm510, %v18, 0
    %v515 = vsel %vm510, %v19, 0
    %517 = vmatprep.subr.mxu0 0.0
    %518 = vmatpush1.msra.mxu0 0.0
    %519 = vmatprep.subr.mxu0 0.0
    %520 = vmatpush1.msra.mxu0 0.0
    %521 = vmatprep.subr.mxu0 0.0
    %522 = vmatpush1.msra.mxu0 0.0
    %523 = vmatprep.subr.mxu0 0.0
    %524 = vmatpush1.msra.mxu0 0.0
    %525 = vmatprep.subr.mxu0 0.0
    %526 = vmatpush1.msra.mxu0 %v500
    %527 = vmatprep.subr.mxu0 0.0
    %528 = vmatpush1.msra.mxu0 %v495
    %529 = vmatprep.subr.mxu0 0.0
    %530 = vmatpush1.msra.mxu0 %v425
    %531 = vmatprep.subr.mxu0 0.0
    %532 = vmatpush1.msra.mxu0 %v420
    %533 = vmatprep.subr.mxu0 0.0
    %534 = vmatpush1.msra.mxu0 %v350
    %535 = vmatprep.subr.mxu0 0.0
    %536 = vmatpush1.msra.mxu0 %v345
    %537 = vmatprep.subr.mxu0 0.0
    %538 = vmatpush1.msra.mxu0 %v275
    %539 = vmatprep.subr.mxu0 0.0
    %540 = vmatpush1.msra.mxu0 %v270
    %541 = vmatprep.subr.mxu0 0.0
    %542 = vmatpush1.msra.mxu0 %v200
    %543 = vmatprep.subr.mxu0 0.0
    %544 = vmatpush1.msra.mxu0 %v195
    %545 = vmatprep.subr.mxu0 0.0
    %546 = vmatpush1.msra.mxu0 %v125
    %547 = vmatprep.subr.mxu0 0.0
    %548 = vmatpush1.msra.mxu0 %v120
    %549 = vmatprep.subr.mxu0 0.0
    %550 = vmatpush2.msra.mxu0 0.0
    %551 = vmatprep.subr.mxu0 0.0
    %552 = vmatpush2.msra.mxu0 0.0
    %553 = vmatprep.subr.mxu0 0.0
    %554 = vmatpush2.msra.mxu0 0.0
    %555 = vmatprep.subr.mxu0 0.0
    %556 = vmatpush2.msra.mxu0 0.0
    %557 = vmatprep.subr.mxu0 0.0
    %558 = vmatpush2.msra.mxu0 0.0
    %559 = vmatprep.subr.mxu0 0.0
    %560 = vmatpush2.msra.mxu0 0.0
    %561 = vmatprep.subr.mxu0 0.0
    %562 = vmatpush2.msra.mxu0 0.0
    %563 = vmatprep.subr.mxu0 0.0
    %564 = vmatpush2.msra.mxu0 0.0
    %565 = vmatprep.subr.mxu0 0.0
    %566 = vmatpush2.msra.mxu0 0.0
    %567 = vmatprep.subr.mxu0 0.0
    %568 = vmatpush2.msra.mxu0 0.0
    %569 = vmatprep.subr.mxu0 0.0
    %570 = vmatpush2.msra.mxu0 0.0
    %571 = vmatprep.subr.mxu0 0.0
    %572 = vmatpush2.msra.mxu0 0.0
    %573 = vmatprep.subr.mxu0 0.0
    %574 = vmatpush2.msra.mxu0 0.0
    %575 = vmatprep.subr.mxu0 0.0
    %576 = vmatpush2.msra.mxu0 0.0
    %577 = vmatprep.subr.mxu0 0.0
    %578 = vmatpush2.msra.mxu0 0.0
    %579 = vmatprep.subr.mxu0 0.0
    %580 = vmatpush2.msra.mxu0 0.0
    %581 = vmatprep.mubr.f32.mxu0 0.0
    %582 = vmatmul.mubr.f32.gmra.mxu0 %v512
    %v583 = vpop.f32.mrf.mxu0
    %v584 = vadd.f32 %v508, %v583
    %v585 = vpop.f32.mrf.mxu0
    %586 = vmatprep.mubr.f32.mxu0 0.0
    %587 = vmatmul.mubr.f32.gmra.mxu0 %v515
    %v588 = vpop.f32.mrf.mxu0
    %v589 = vadd.f32 %v508, %v588
    %v590 = vpop.f32.mrf.mxu0
    %591 = vdwg.mxu0
    %v592 = vadd.f32 %v584, 1e-06
    %v593 = vadd.f32 %v589, 1e-06
    %v594 = vmax.f32 %v592, 0.0
    %v595 = vmax.f32 %v593, 0.0
    %s596 = scalar_lea.vmem %s2, 192
    %v597 = vld [vmem:[%s596] sm:$0xff]
    %v598 = vld [vmem:[%s596 + $0x8] sm:$0xff]
    %v599 = vld [vmem:[%s596 + $0x10] sm:$0xff]
    %v600 = vld [vmem:[%s596 + $0x18] sm:$0xff]
    %v601 = vld [vmem:[%s596 + $0x20] sm:$0xff]
    %v602 = vld [vmem:[%s596 + $0x28] sm:$0xff]
    %v603 = vld [vmem:[%s596 + $0x30] sm:$0xff]
    %v604 = vld [vmem:[%s596 + $0x38] sm:$0xff]
    %v605 = vld [vmem:[%s596 + $0x40] sm:$0xff]
    %v606 = vld [vmem:[%s596 + $0x48] sm:$0xff]
    %v607 = vld [vmem:[%s596 + $0x50] sm:$0xff]
    %v608 = vld [vmem:[%s596 + $0x58] sm:$0xff]
    %v609 = vld [vmem:[%s596 + $0x60] sm:$0xff]
    %v610 = vld [vmem:[%s596 + $0x68] sm:$0xff]
    %v611 = vld [vmem:[%s596 + $0x70] sm:$0xff]
    %v612 = vld [vmem:[%s596 + $0x78] sm:$0xff]
    %v613 = vld [vmem:[%s596 + $0x80] sm:$0xff]
    %v614 = vld [vmem:[%s596 + $0x88] sm:$0xff]
    %v615 = vld [vmem:[%s596 + $0x90] sm:$0xff]
    %v616 = vld [vmem:[%s596 + $0x98] sm:$0xff]
    %v617 = vld [vmem:[%s596 + $0xa0] sm:$0xff]
    %v618 = vld [vmem:[%s596 + $0xa8] sm:$0xff]
    %v619 = vld [vmem:[%s596 + $0xb0] sm:$0xff]
    %v620 = vld [vmem:[%s596 + $0xb8] sm:$0xff]
    %v622 = vsel %vm46, %v594, 0
    %v625 = vsel %vm46, %v595, 0
    %627 = vmatprep.subr.mxu0 0.0
    %628 = vmatpush1.msra.mxu0 0.0
    %629 = vmatprep.subr.mxu0 0.0
    %630 = vmatpush1.msra.mxu0 0.0
    %631 = vmatprep.subr.mxu0 0.0
    %632 = vmatpush1.msra.mxu0 0.0
    %633 = vmatprep.subr.mxu0 0.0
    %634 = vmatpush1.msra.mxu0 0.0
    %635 = vmatprep.subr.mxu0 0.0
    %636 = vmatpush1.msra.mxu0 0.0
    %637 = vmatprep.subr.mxu0 0.0
    %638 = vmatpush1.msra.mxu0 0.0
    %639 = vmatprep.subr.mxu0 0.0
    %640 = vmatpush1.msra.mxu0 0.0
    %641 = vmatprep.subr.mxu0 0.0
    %642 = vmatpush1.msra.mxu0 0.0
    %643 = vmatprep.subr.mxu0 0.0
    %644 = vmatpush1.msra.mxu0 0.0
    %645 = vmatprep.subr.mxu0 0.0
    %646 = vmatpush1.msra.mxu0 0.0
    %647 = vmatprep.subr.mxu0 0.0
    %648 = vmatpush1.msra.mxu0 0.0
    %649 = vmatprep.subr.mxu0 0.0
    %650 = vmatpush1.msra.mxu0 0.0
    %651 = vmatprep.subr.mxu0 0.0
    %652 = vmatpush1.msra.mxu0 %v600
    %653 = vmatprep.subr.mxu0 0.0
    %654 = vmatpush1.msra.mxu0 %v599
    %655 = vmatprep.subr.mxu0 0.0
    %656 = vmatpush1.msra.mxu0 %v598
    %657 = vmatprep.subr.mxu0 0.0
    %658 = vmatpush1.msra.mxu0 %v597
    %659 = vmatprep.subr.mxu0 0.0
    %660 = vmatpush2.msra.mxu0 0.0
    %661 = vmatprep.subr.mxu0 0.0
    %662 = vmatpush2.msra.mxu0 0.0
    %663 = vmatprep.subr.mxu0 0.0
    %664 = vmatpush2.msra.mxu0 0.0
    %665 = vmatprep.subr.mxu0 0.0
    %666 = vmatpush2.msra.mxu0 0.0
    %667 = vmatprep.subr.mxu0 0.0
    %668 = vmatpush2.msra.mxu0 0.0
    %669 = vmatprep.subr.mxu0 0.0
    %670 = vmatpush2.msra.mxu0 0.0
    %671 = vmatprep.subr.mxu0 0.0
    %672 = vmatpush2.msra.mxu0 0.0
    %673 = vmatprep.subr.mxu0 0.0
    %674 = vmatpush2.msra.mxu0 0.0
    %675 = vmatprep.subr.mxu0 0.0
    %676 = vmatpush2.msra.mxu0 0.0
    %677 = vmatprep.subr.mxu0 0.0
    %678 = vmatpush2.msra.mxu0 0.0
    %679 = vmatprep.subr.mxu0 0.0
    %680 = vmatpush2.msra.mxu0 0.0
    %681 = vmatprep.subr.mxu0 0.0
    %682 = vmatpush2.msra.mxu0 0.0
    %683 = vmatprep.subr.mxu0 0.0
    %684 = vmatpush2.msra.mxu0 0.0
    %685 = vmatprep.subr.mxu0 0.0
    %686 = vmatpush2.msra.mxu0 0.0
    %687 = vmatprep.subr.mxu0 0.0
    %688 = vmatpush2.msra.mxu0 0.0
    %689 = vmatprep.subr.mxu0 0.0
    %690 = vmatpush2.msra.mxu0 0.0
    %691 = vmatprep.mubr.f32.mxu0 0.0
    %692 = vmatmul.mubr.f32.gmra.mxu0 %v622
    %v693 = vpop.f32.mrf.mxu0
    %v694 = vadd.f32 0.0, %v693
    %v695 = vpop.f32.mrf.mxu0
    %696 = vmatprep.mubr.f32.mxu0 0.0
    %697 = vmatmul.mubr.f32.gmra.mxu0 %v625
    %v698 = vpop.f32.mrf.mxu0
    %v699 = vadd.f32 0.0, %v698
    %v700 = vpop.f32.mrf.mxu0
    %701 = vdwg.mxu0
    %702 = vmatprep.subr.mxu0 0.0
    %703 = vmatpush1.msra.mxu0 0.0
    %704 = vmatprep.subr.mxu0 0.0
    %705 = vmatpush1.msra.mxu0 0.0
    %706 = vmatprep.subr.mxu0 0.0
    %707 = vmatpush1.msra.mxu0 0.0
    %708 = vmatprep.subr.mxu0 0.0
    %709 = vmatpush1.msra.mxu0 0.0
    %710 = vmatprep.subr.mxu0 0.0
    %711 = vmatpush1.msra.mxu0 0.0
    %712 = vmatprep.subr.mxu0 0.0
    %713 = vmatpush1.msra.mxu0 0.0
    %714 = vmatprep.subr.mxu0 0.0
    %715 = vmatpush1.msra.mxu0 0.0
    %716 = vmatprep.subr.mxu0 0.0
    %717 = vmatpush1.msra.mxu0 0.0
    %718 = vmatprep.subr.mxu0 0.0
    %719 = vmatpush1.msra.mxu0 0.0
    %720 = vmatprep.subr.mxu0 0.0
    %721 = vmatpush1.msra.mxu0 0.0
    %722 = vmatprep.subr.mxu0 0.0
    %723 = vmatpush1.msra.mxu0 0.0
    %724 = vmatprep.subr.mxu0 0.0
    %725 = vmatpush1.msra.mxu0 0.0
    %726 = vmatprep.subr.mxu0 0.0
    %727 = vmatpush1.msra.mxu0 %v604
    %728 = vmatprep.subr.mxu0 0.0
    %729 = vmatpush1.msra.mxu0 %v603
    %730 = vmatprep.subr.mxu0 0.0
    %731 = vmatpush1.msra.mxu0 %v602
    %732 = vmatprep.subr.mxu0 0.0
    %733 = vmatpush1.msra.mxu0 %v601
    %734 = vmatprep.subr.mxu0 0.0
    %735 = vmatpush2.msra.mxu0 0.0
    %736 = vmatprep.subr.mxu0 0.0
    %737 = vmatpush2.msra.mxu0 0.0
    %738 = vmatprep.subr.mxu0 0.0
    %739 = vmatpush2.msra.mxu0 0.0
    %740 = vmatprep.subr.mxu0 0.0
    %741 = vmatpush2.msra.mxu0 0.0
    %742 = vmatprep.subr.mxu0 0.0
    %743 = vmatpush2.msra.mxu0 0.0
    %744 = vmatprep.subr.mxu0 0.0
    %745 = vmatpush2.msra.mxu0 0.0
    %746 = vmatprep.subr.mxu0 0.0
    %747 = vmatpush2.msra.mxu0 0.0
    %748 = vmatprep.subr.mxu0 0.0
    %749 = vmatpush2.msra.mxu0 0.0
    %750 = vmatprep.subr.mxu0 0.0
    %751 = vmatpush2.msra.mxu0 0.0
    %752 = vmatprep.subr.mxu0 0.0
    %753 = vmatpush2.msra.mxu0 0.0
    %754 = vmatprep.subr.mxu0 0.0
    %755 = vmatpush2.msra.mxu0 0.0
    %756 = vmatprep.subr.mxu0 0.0
    %757 = vmatpush2.msra.mxu0 0.0
    %758 = vmatprep.subr.mxu0 0.0
    %759 = vmatpush2.msra.mxu0 0.0
    %760 = vmatprep.subr.mxu0 0.0
    %761 = vmatpush2.msra.mxu0 0.0
    %762 = vmatprep.subr.mxu0 0.0
    %763 = vmatpush2.msra.mxu0 0.0
    %764 = vmatprep.subr.mxu0 0.0
    %765 = vmatpush2.msra.mxu0 0.0
    %766 = vmatprep.mubr.f32.mxu0 0.0
    %767 = vmatmul.mubr.f32.gmra.mxu0 %v622
    %v768 = vpop.f32.mrf.mxu0
    %v769 = vadd.f32 0.0, %v768
    %v770 = vpop.f32.mrf.mxu0
    %771 = vmatprep.mubr.f32.mxu0 0.0
    %772 = vmatmul.mubr.f32.gmra.mxu0 %v625
    %v773 = vpop.f32.mrf.mxu0
    %v774 = vadd.f32 0.0, %v773
    %v775 = vpop.f32.mrf.mxu0
    %776 = vdwg.mxu0
    %777 = vmatprep.subr.mxu0 0.0
    %778 = vmatpush1.msra.mxu0 0.0
    %779 = vmatprep.subr.mxu0 0.0
    %780 = vmatpush1.msra.mxu0 0.0
    %781 = vmatprep.subr.mxu0 0.0
    %782 = vmatpush1.msra.mxu0 0.0
    %783 = vmatprep.subr.mxu0 0.0
    %784 = vmatpush1.msra.mxu0 0.0
    %785 = vmatprep.subr.mxu0 0.0
    %786 = vmatpush1.msra.mxu0 0.0
    %787 = vmatprep.subr.mxu0 0.0
    %788 = vmatpush1.msra.mxu0 0.0
    %789 = vmatprep.subr.mxu0 0.0
    %790 = vmatpush1.msra.mxu0 0.0
    %791 = vmatprep.subr.mxu0 0.0
    %792 = vmatpush1.msra.mxu0 0.0
    %793 = vmatprep.subr.mxu0 0.0
    %794 = vmatpush1.msra.mxu0 0.0
    %795 = vmatprep.subr.mxu0 0.0
    %796 = vmatpush1.msra.mxu0 0.0
    %797 = vmatprep.subr.mxu0 0.0
    %798 = vmatpush1.msra.mxu0 0.0
    %799 = vmatprep.subr.mxu0 0.0
    %800 = vmatpush1.msra.mxu0 0.0
    %801 = vmatprep.subr.mxu0 0.0
    %802 = vmatpush1.msra.mxu0 %v608
    %803 = vmatprep.subr.mxu0 0.0
    %804 = vmatpush1.msra.mxu0 %v607
    %805 = vmatprep.subr.mxu0 0.0
    %806 = vmatpush1.msra.mxu0 %v606
    %807 = vmatprep.subr.mxu0 0.0
    %808 = vmatpush1.msra.mxu0 %v605
    %809 = vmatprep.subr.mxu0 0.0
    %810 = vmatpush2.msra.mxu0 0.0
    %811 = vmatprep.subr.mxu0 0.0
    %812 = vmatpush2.msra.mxu0 0.0
    %813 = vmatprep.subr.mxu0 0.0
    %814 = vmatpush2.msra.mxu0 0.0
    %815 = vmatprep.subr.mxu0 0.0
    %816 = vmatpush2.msra.mxu0 0.0
    %817 = vmatprep.subr.mxu0 0.0
    %818 = vmatpush2.msra.mxu0 0.0
    %819 = vmatprep.subr.mxu0 0.0
    %820 = vmatpush2.msra.mxu0 0.0
    %821 = vmatprep.subr.mxu0 0.0
    %822 = vmatpush2.msra.mxu0 0.0
    %823 = vmatprep.subr.mxu0 0.0
    %824 = vmatpush2.msra.mxu0 0.0
    %825 = vmatprep.subr.mxu0 0.0
    %826 = vmatpush2.msra.mxu0 0.0
    %827 = vmatprep.subr.mxu0 0.0
    %828 = vmatpush2.msra.mxu0 0.0
    %829 = vmatprep.subr.mxu0 0.0
    %830 = vmatpush2.msra.mxu0 0.0
    %831 = vmatprep.subr.mxu0 0.0
    %832 = vmatpush2.msra.mxu0 0.0
    %833 = vmatprep.subr.mxu0 0.0
    %834 = vmatpush2.msra.mxu0 0.0
    %835 = vmatprep.subr.mxu0 0.0
    %836 = vmatpush2.msra.mxu0 0.0
    %837 = vmatprep.subr.mxu0 0.0
    %838 = vmatpush2.msra.mxu0 0.0
    %839 = vmatprep.subr.mxu0 0.0
    %840 = vmatpush2.msra.mxu0 0.0
    %841 = vmatprep.mubr.f32.mxu0 0.0
    %842 = vmatmul.mubr.f32.gmra.mxu0 %v622
    %v843 = vpop.f32.mrf.mxu0
    %v844 = vadd.f32 0.0, %v843
    %v845 = vpop.f32.mrf.mxu0
    %846 = vmatprep.mubr.f32.mxu0 0.0
    %847 = vmatmul.mubr.f32.gmra.mxu0 %v625
    %v848 = vpop.f32.mrf.mxu0
    %v849 = vadd.f32 0.0, %v848
    %v850 = vpop.f32.mrf.mxu0
    %851 = vdwg.mxu0
    %852 = vmatprep.subr.mxu0 0.0
    %853 = vmatpush1.msra.mxu0 0.0
    %854 = vmatprep.subr.mxu0 0.0
    %855 = vmatpush1.msra.mxu0 0.0
    %856 = vmatprep.subr.mxu0 0.0
    %857 = vmatpush1.msra.mxu0 0.0
    %858 = vmatprep.subr.mxu0 0.0
    %859 = vmatpush1.msra.mxu0 0.0
    %860 = vmatprep.subr.mxu0 0.0
    %861 = vmatpush1.msra.mxu0 0.0
    %862 = vmatprep.subr.mxu0 0.0
    %863 = vmatpush1.msra.mxu0 0.0
    %864 = vmatprep.subr.mxu0 0.0
    %865 = vmatpush1.msra.mxu0 0.0
    %866 = vmatprep.subr.mxu0 0.0
    %867 = vmatpush1.msra.mxu0 0.0
    %868 = vmatprep.subr.mxu0 0.0
    %869 = vmatpush1.msra.mxu0 0.0
    %870 = vmatprep.subr.mxu0 0.0
    %871 = vmatpush1.msra.mxu0 0.0
    %872 = vmatprep.subr.mxu0 0.0
    %873 = vmatpush1.msra.mxu0 0.0
    %874 = vmatprep.subr.mxu0 0.0
    %875 = vmatpush1.msra.mxu0 0.0
    %876 = vmatprep.subr.mxu0 0.0
    %877 = vmatpush1.msra.mxu0 %v612
    %878 = vmatprep.subr.mxu0 0.0
    %879 = vmatpush1.msra.mxu0 %v611
    %880 = vmatprep.subr.mxu0 0.0
    %881 = vmatpush1.msra.mxu0 %v610
    %882 = vmatprep.subr.mxu0 0.0
    %883 = vmatpush1.msra.mxu0 %v609
    %884 = vmatprep.subr.mxu0 0.0
    %885 = vmatpush2.msra.mxu0 0.0
    %886 = vmatprep.subr.mxu0 0.0
    %887 = vmatpush2.msra.mxu0 0.0
    %888 = vmatprep.subr.mxu0 0.0
    %889 = vmatpush2.msra.mxu0 0.0
    %890 = vmatprep.subr.mxu0 0.0
    %891 = vmatpush2.msra.mxu0 0.0
    %892 = vmatprep.subr.mxu0 0.0
    %893 = vmatpush2.msra.mxu0 0.0
    %894 = vmatprep.subr.mxu0 0.0
    %895 = vmatpush2.msra.mxu0 0.0
    %896 = vmatprep.subr.mxu0 0.0
    %897 = vmatpush2.msra.mxu0 0.0
    %898 = vmatprep.subr.mxu0 0.0
    %899 = vmatpush2.msra.mxu0 0.0
    %900 = vmatprep.subr.mxu0 0.0
    %901 = vmatpush2.msra.mxu0 0.0
    %902 = vmatprep.subr.mxu0 0.0
    %903 = vmatpush2.msra.mxu0 0.0
    %904 = vmatprep.subr.mxu0 0.0
    %905 = vmatpush2.msra.mxu0 0.0
    %906 = vmatprep.subr.mxu0 0.0
    %907 = vmatpush2.msra.mxu0 0.0
    %908 = vmatprep.subr.mxu0 0.0
    %909 = vmatpush2.msra.mxu0 0.0
    %910 = vmatprep.subr.mxu0 0.0
    %911 = vmatpush2.msra.mxu0 0.0
    %912 = vmatprep.subr.mxu0 0.0
    %913 = vmatpush2.msra.mxu0 0.0
    %914 = vmatprep.subr.mxu0 0.0
    %915 = vmatpush2.msra.mxu0 0.0
    %916 = vmatprep.mubr.f32.mxu0 0.0
    %917 = vmatmul.mubr.f32.gmra.mxu0 %v622
    %v918 = vpop.f32.mrf.mxu0
    %v919 = vadd.f32 0.0, %v918
    %v920 = vpop.f32.mrf.mxu0
    %921 = vmatprep.mubr.f32.mxu0 0.0
    %922 = vmatmul.mubr.f32.gmra.mxu0 %v625
    %v923 = vpop.f32.mrf.mxu0
    %v924 = vadd.f32 0.0, %v923
    %v925 = vpop.f32.mrf.mxu0
    %926 = vdwg.mxu0
    %927 = vmatprep.subr.mxu0 0.0
    %928 = vmatpush1.msra.mxu0 0.0
    %929 = vmatprep.subr.mxu0 0.0
    %930 = vmatpush1.msra.mxu0 0.0
    %931 = vmatprep.subr.mxu0 0.0
    %932 = vmatpush1.msra.mxu0 0.0
    %933 = vmatprep.subr.mxu0 0.0
    %934 = vmatpush1.msra.mxu0 0.0
    %935 = vmatprep.subr.mxu0 0.0
    %936 = vmatpush1.msra.mxu0 0.0
    %937 = vmatprep.subr.mxu0 0.0
    %938 = vmatpush1.msra.mxu0 0.0
    %939 = vmatprep.subr.mxu0 0.0
    %940 = vmatpush1.msra.mxu0 0.0
    %941 = vmatprep.subr.mxu0 0.0
    %942 = vmatpush1.msra.mxu0 0.0
    %943 = vmatprep.subr.mxu0 0.0
    %944 = vmatpush1.msra.mxu0 0.0
    %945 = vmatprep.subr.mxu0 0.0
    %946 = vmatpush1.msra.mxu0 0.0
    %947 = vmatprep.subr.mxu0 0.0
    %948 = vmatpush1.msra.mxu0 0.0
    %949 = vmatprep.subr.mxu0 0.0
    %950 = vmatpush1.msra.mxu0 0.0
    %951 = vmatprep.subr.mxu0 0.0
    %952 = vmatpush1.msra.mxu0 %v616
    %953 = vmatprep.subr.mxu0 0.0
    %954 = vmatpush1.msra.mxu0 %v615
    %955 = vmatprep.subr.mxu0 0.0
    %956 = vmatpush1.msra.mxu0 %v614
    %957 = vmatprep.subr.mxu0 0.0
    %958 = vmatpush1.msra.mxu0 %v613
    %959 = vmatprep.subr.mxu0 0.0
    %960 = vmatpush2.msra.mxu0 0.0
    %961 = vmatprep.subr.mxu0 0.0
    %962 = vmatpush2.msra.mxu0 0.0
    %963 = vmatprep.subr.mxu0 0.0
    %964 = vmatpush2.msra.mxu0 0.0
    %965 = vmatprep.subr.mxu0 0.0
    %966 = vmatpush2.msra.mxu0 0.0
    %967 = vmatprep.subr.mxu0 0.0
    %968 = vmatpush2.msra.mxu0 0.0
    %969 = vmatprep.subr.mxu0 0.0
    %970 = vmatpush2.msra.mxu0 0.0
    %971 = vmatprep.subr.mxu0 0.0
    %972 = vmatpush2.msra.mxu0 0.0
    %973 = vmatprep.subr.mxu0 0.0
    %974 = vmatpush2.msra.mxu0 0.0
    %975 = vmatprep.subr.mxu0 0.0
    %976 = vmatpush2.msra.mxu0 0.0
    %977 = vmatprep.subr.mxu0 0.0
    %978 = vmatpush2.msra.mxu0 0.0
    %979 = vmatprep.subr.mxu0 0.0
    %980 = vmatpush2.msra.mxu0 0.0
    %981 = vmatprep.subr.mxu0 0.0
    %982 = vmatpush2.msra.mxu0 0.0
    %983 = vmatprep.subr.mxu0 0.0
    %984 = vmatpush2.msra.mxu0 0.0
    %985 = vmatprep.subr.mxu0 0.0
    %986 = vmatpush2.msra.mxu0 0.0
    %987 = vmatprep.subr.mxu0 0.0
    %988 = vmatpush2.msra.mxu0 0.0
    %989 = vmatprep.subr.mxu0 0.0
    %990 = vmatpush2.msra.mxu0 0.0
    %991 = vmatprep.mubr.f32.mxu0 0.0
    %992 = vmatmul.mubr.f32.gmra.mxu0 %v622
    %v993 = vpop.f32.mrf.mxu0
    %v994 = vadd.f32 0.0, %v993
    %v995 = vpop.f32.mrf.mxu0
    %996 = vmatprep.mubr.f32.mxu0 0.0
    %997 = vmatmul.mubr.f32.gmra.mxu0 %v625
    %v998 = vpop.f32.mrf.mxu0
    %v999 = vadd.f32 0.0, %v998
    %v1000 = vpop.f32.mrf.mxu0
    %1001 = vdwg.mxu0
    %1002 = vmatprep.subr.mxu0 0.0
    %1003 = vmatpush1.msra.mxu0 0.0
    %1004 = vmatprep.subr.mxu0 0.0
    %1005 = vmatpush1.msra.mxu0 0.0
    %1006 = vmatprep.subr.mxu0 0.0
    %1007 = vmatpush1.msra.mxu0 0.0
    %1008 = vmatprep.subr.mxu0 0.0
    %1009 = vmatpush1.msra.mxu0 0.0
    %1010 = vmatprep.subr.mxu0 0.0
    %1011 = vmatpush1.msra.mxu0 0.0
    %1012 = vmatprep.subr.mxu0 0.0
    %1013 = vmatpush1.msra.mxu0 0.0
    %1014 = vmatprep.subr.mxu0 0.0
    %1015 = vmatpush1.msra.mxu0 0.0
    %1016 = vmatprep.subr.mxu0 0.0
    %1017 = vmatpush1.msra.mxu0 0.0
    %1018 = vmatprep.subr.mxu0 0.0
    %1019 = vmatpush1.msra.mxu0 0.0
    %1020 = vmatprep.subr.mxu0 0.0
    %1021 = vmatpush1.msra.mxu0 0.0
    %1022 = vmatprep.subr.mxu0 0.0
    %1023 = vmatpush1.msra.mxu0 0.0
    %1024 = vmatprep.subr.mxu0 0.0
    %1025 = vmatpush1.msra.mxu0 0.0
    %1026 = vmatprep.subr.mxu0 0.0
    %1027 = vmatpush1.msra.mxu0 %v620
    %1028 = vmatprep.subr.mxu0 0.0
    %1029 = vmatpush1.msra.mxu0 %v619
    %1030 = vmatprep.subr.mxu0 0.0
    %1031 = vmatpush1.msra.mxu0 %v618
    %1032 = vmatprep.subr.mxu0 0.0
    %1033 = vmatpush1.msra.mxu0 %v617
    %1034 = vmatprep.subr.mxu0 0.0
    %1035 = vmatpush2.msra.mxu0 0.0
    %1036 = vmatprep.subr.mxu0 0.0
    %1037 = vmatpush2.msra.mxu0 0.0
    %1038 = vmatprep.subr.mxu0 0.0
    %1039 = vmatpush2.msra.mxu0 0.0
    %1040 = vmatprep.subr.mxu0 0.0
    %1041 = vmatpush2.msra.mxu0 0.0
    %1042 = vmatprep.subr.mxu0 0.0
    %1043 = vmatpush2.msra.mxu0 0.0
    %1044 = vmatprep.subr.mxu0 0.0
    %1045 = vmatpush2.msra.mxu0 0.0
    %1046 = vmatprep.subr.mxu0 0.0
    %1047 = vmatpush2.msra.mxu0 0.0
    %1048 = vmatprep.subr.mxu0 0.0
    %1049 = vmatpush2.msra.mxu0 0.0
    %1050 = vmatprep.subr.mxu0 0.0
    %1051 = vmatpush2.msra.mxu0 0.0
    %1052 = vmatprep.subr.mxu0 0.0
    %1053 = vmatpush2.msra.mxu0 0.0
    %1054 = vmatprep.subr.mxu0 0.0
    %1055 = vmatpush2.msra.mxu0 0.0
    %1056 = vmatprep.subr.mxu0 0.0
    %1057 = vmatpush2.msra.mxu0 0.0
    %1058 = vmatprep.subr.mxu0 0.0
    %1059 = vmatpush2.msra.mxu0 0.0
    %1060 = vmatprep.subr.mxu0 0.0
    %1061 = vmatpush2.msra.mxu0 0.0
    %1062 = vmatprep.subr.mxu0 0.0
    %1063 = vmatpush2.msra.mxu0 0.0
    %1064 = vmatprep.subr.mxu0 0.0
    %1065 = vmatpush2.msra.mxu0 0.0
    %1066 = vmatprep.mubr.f32.mxu0 0.0
    %1067 = vmatmul.mubr.f32.gmra.mxu0 %v622
    %v1068 = vpop.f32.mrf.mxu0
    %v1069 = vadd.f32 0.0, %v1068
    %v1070 = vpop.f32.mrf.mxu0
    %1071 = vmatprep.mubr.f32.mxu0 0.0
    %1072 = vmatmul.mubr.f32.gmra.mxu0 %v625
    %v1073 = vpop.f32.mrf.mxu0
    %v1074 = vadd.f32 0.0, %v1073
    %v1075 = vpop.f32.mrf.mxu0
    %1076 = vdwg.mxu0
    %s1077 = scalar_lea.vmem %s3, 1
    %v1078 = vld [vmem:[%s1077] sm:$0x1]
    %v1080 = vlaneseq
    %v1081 = vshrl.u32 %v1080, 7
    %v1082 = vsub.s32 0, %v1081
    %v1083 = vrot.slane %v1078, %v1082
    %1085 = vmatprep.subr.mxu0 0.0
    %1086 = vmatpush1.msra.mxu0 0.0
    %1087 = vmatprep.subr.mxu0 0.0
    %1088 = vmatpush1.msra.mxu0 0.0
    %1089 = vmatprep.subr.mxu0 0.0
    %1090 = vmatpush1.msra.mxu0 0.0
    %1091 = vmatprep.subr.mxu0 0.0
    %1092 = vmatpush1.msra.mxu0 0.0
    %1093 = vmatprep.subr.mxu0 0.0
    %1094 = vmatpush1.msra.mxu0 %v1074
    %1095 = vmatprep.subr.mxu0 0.0
    %1096 = vmatpush1.msra.mxu0 %v1069
    %1097 = vmatprep.subr.mxu0 0.0
    %1098 = vmatpush1.msra.mxu0 %v999
    %1099 = vmatprep.subr.mxu0 0.0
    %1100 = vmatpush1.msra.mxu0 %v994
    %1101 = vmatprep.subr.mxu0 0.0
    %1102 = vmatpush1.msra.mxu0 %v924
    %1103 = vmatprep.subr.mxu0 0.0
    %1104 = vmatpush1.msra.mxu0 %v919
    %1105 = vmatprep.subr.mxu0 0.0
    %1106 = vmatpush1.msra.mxu0 %v849
    %1107 = vmatprep.subr.mxu0 0.0
    %1108 = vmatpush1.msra.mxu0 %v844
    %1109 = vmatprep.subr.mxu0 0.0
    %1110 = vmatpush1.msra.mxu0 %v774
    %1111 = vmatprep.subr.mxu0 0.0
    %1112 = vmatpush1.msra.mxu0 %v769
    %1113 = vmatprep.subr.mxu0 0.0
    %1114 = vmatpush1.msra.mxu0 %v699
    %1115 = vmatprep.subr.mxu0 0.0
    %1116 = vmatpush1.msra.mxu0 %v694
    %1117 = vmatprep.subr.mxu0 0.0
    %1118 = vmatpush2.msra.mxu0 0.0
    %1119 = vmatprep.subr.mxu0 0.0
    %1120 = vmatpush2.msra.mxu0 0.0
    %1121 = vmatprep.subr.mxu0 0.0
    %1122 = vmatpush2.msra.mxu0 0.0
    %1123 = vmatprep.subr.mxu0 0.0
    %1124 = vmatpush2.msra.mxu0 0.0
    %1125 = vmatprep.subr.mxu0 0.0
    %1126 = vmatpush2.msra.mxu0 0.0
    %1127 = vmatprep.subr.mxu0 0.0
    %1128 = vmatpush2.msra.mxu0 0.0
    %1129 = vmatprep.subr.mxu0 0.0
    %1130 = vmatpush2.msra.mxu0 0.0
    %1131 = vmatprep.subr.mxu0 0.0
    %1132 = vmatpush2.msra.mxu0 0.0
    %1133 = vmatprep.subr.mxu0 0.0
    %1134 = vmatpush2.msra.mxu0 0.0
    %1135 = vmatprep.subr.mxu0 0.0
    %1136 = vmatpush2.msra.mxu0 0.0
    %1137 = vmatprep.subr.mxu0 0.0
    %1138 = vmatpush2.msra.mxu0 0.0
    %1139 = vmatprep.subr.mxu0 0.0
    %1140 = vmatpush2.msra.mxu0 0.0
    %1141 = vmatprep.subr.mxu0 0.0
    %1142 = vmatpush2.msra.mxu0 0.0
    %1143 = vmatprep.subr.mxu0 0.0
    %1144 = vmatpush2.msra.mxu0 0.0
    %1145 = vmatprep.subr.mxu0 0.0
    %1146 = vmatpush2.msra.mxu0 0.0
    %1147 = vmatprep.subr.mxu0 0.0
    %1148 = vmatpush2.msra.mxu0 0.0
    %1149 = vmatprep.mubr.f32.mxu0 0.0
    %1150 = vmatmul.mubr.f32.gmra.mxu0 %v512
    %v1151 = vpop.f32.mrf.mxu0
    %v1152 = vadd.f32 %v1083, %v1151
    %v1153 = vpop.f32.mrf.mxu0
    %1154 = vmatprep.mubr.f32.mxu0 0.0
    %1155 = vmatmul.mubr.f32.gmra.mxu0 %v515
    %v1156 = vpop.f32.mrf.mxu0
    %v1157 = vadd.f32 %v1083, %v1156
    %v1158 = vpop.f32.mrf.mxu0
    %1159 = vdwg.mxu0
    %v1160 = vadd.f32 %v1152, 1e-06
    %v1161 = vadd.f32 %v1157, 1e-06
    %1162 = vst.msk [vmem:[#allocation2] sm:$0xff] %vm46, %v1160
    %1163 = vst.msk [vmem:[#allocation2 + $0x8] sm:$0xff] %vm46, %v1161
    // Predicated region
    $region18: #{tpu_custom_call.1} parent=1 // pred_check
      _
    $region19: #{tpu_custom_call.1} parent=1 // pred_check_branch
      %1165 = sbr.rel (0) target = $region21
    $region20: #{tpu_custom_call.1} parent=1 // pred_region
      %s1167 = ssub.s32 256, 256
      %1168 = vsyncadd [#allocation3], %s1167
      %s1169 = sshll.u32 [#allocation2], 4
      %s1170 = int_to_ptr.vmem [resolvable:$true] %s1169
      %1175 = dma.vmem_to_hbm [thread:$0]  %s1170, 256, %s4, [#allocation3], 128, 128, 8
    $region21: #{tpu_custom_call.1} parent=1 // pred_fallthru
      _
    // Predicated region
    $region22: #{tpu_custom_call.1} parent=1 // pred_check
      _
    $region23: #{tpu_custom_call.1} parent=1 // pred_check_branch
      %1177 = sbr.rel (0) target = $region25
    $region24: #{tpu_custom_call.1} parent=1 // pred_region
      %1178 = dma.done [#allocation3], 256
    $region25: #{tpu_custom_call.1} parent=1 // pred_fallthru
      _
    %1179 = vsyncpa [#allocation3], 1

</llo_original>
